<compile_context>
chip_gen: v5e
topology: v5e:2x2
jax: 0.10.0
libtpu: 0.0.40
codegen_flags: <defaults>
</compile_context>

<pallas_src>
import functools

import jax
import jax.numpy as jnp
from jax.experimental import pallas as pl
from jax.experimental.pallas import tpu as pltpu

EPS = 1e-10
LANES = 128
MAX_TILE_ROWS = 8192                   # (8192,128) f32 block = 4 MiB/stream
VMEM_LIMIT_BYTES = 32 * 1024 * 1024    # covers 2 streams x double buffering at max tile


def _focal_elementwise(x_f32, t, *, gamma, alpha0, alpha1):
    """Per-element focal loss. x_f32: float32 logits, t: targets (native dtype)."""
    # Matches the PyTorch reference's `.long()` truncation for labels in [0, 2).
    is_one = t >= 1
    # Fold the 2-class gather into the logit sign (sigmoid(-x) == 1 - sigmoid(x))
    # and compute sigmoid via a single EUP tanh: sigmoid(z) = 0.5*tanh(z/2) + 0.5.
    z = jnp.where(is_one, x_f32, -x_f32)
    pt = 0.5 * jnp.tanh(0.5 * z) + 0.5
    logpt = jnp.log(pt + EPS)
    if not (alpha0 == 1.0 and alpha1 == 1.0):
        logpt = logpt * jnp.where(is_one, jnp.float32(alpha1), jnp.float32(alpha0))
    if gamma == 0:
        return -logpt
    if float(gamma).is_integer():
        return -((1.0 - pt) ** int(gamma)) * logpt      # VPU multiplies, no extra EUP
    # TODO(synk): non-integer gamma uses exp(g*log(max(1-pt, EPS))), i.e. EPS**g
    # instead of exactly 0 at pt == 1, and adds 2 EUP ops/element.
    return -jnp.exp(gamma * jnp.log(jnp.maximum(1.0 - pt, EPS))) * logpt


def _focal_kernel(x_ref, t_ref, out_ref, *, gamma, alpha0, alpha1):
    @pl.when(pl.program_id(0) == 0)
    def _():
        out_ref[...] = jnp.zeros_like(out_ref)

    loss = _focal_elementwise(x_ref[...].astype(jnp.float32), t_ref[...],
                              gamma=gamma, alpha0=alpha0, alpha1=alpha1)
    # Reduce the block to a (1, 128) partial and accumulate into the resident
    # output block (init at step 0, written back to HBM once at the end).
    out_ref[...] += jnp.sum(loss, axis=0, keepdims=True)


def focal_loss(outputs, targets, *, gamma=0.0, alpha=None, size_average=True):
    """Matches FocalLoss.forward(outputs, targets) from the PyTorch module."""
    if isinstance(alpha, (float, int)) and not isinstance(alpha, bool):
        alpha0, alpha1 = 1.0 - float(alpha), float(alpha)
    elif isinstance(alpha, (list, tuple)):
        alpha0, alpha1 = float(alpha[0]), float(alpha[1])
    else:
        alpha0 = alpha1 = 1.0

    x = outputs.reshape(-1)     # native dtype; upcast happens in-kernel
    t = targets.reshape(-1)     # native dtype; no wrapper-side cast
    n = x.shape[0]

    rows = n // LANES
    tile_rows = min(MAX_TILE_ROWS, rows)
    blocks = rows // tile_rows if tile_rows > 0 else 0
    kernel_rows = blocks * tile_rows
    n_kernel = kernel_rows * LANES

    total = jnp.float32(0.0)
    if blocks > 0:
        if n % LANES == 0:
            # Free reshape of the whole flat array; the grid simply never
            # visits the (rows - kernel_rows) trailing rows.
            x2 = x.reshape(rows, LANES)
            t2 = t.reshape(rows, LANES)
        else:
            # TODO(synk): misaligned N still costs one prefix copy here; a
            # manual-DMA (memory_space=pl.ANY) variant would avoid it.
            x2 = x[:n_kernel].reshape(kernel_rows, LANES)
            t2 = t[:n_kernel].reshape(kernel_rows, LANES)

        kernel = functools.partial(_focal_kernel, gamma=float(gamma),
                                   alpha0=alpha0, alpha1=alpha1)
        # TODO(synk): on v7x a leading CORE_PARALLEL grid axis could shard this
        # HBM-bound reduction across both TensorCores.
        partial = pl.pallas_call(
            kernel,
            out_shape=jax.ShapeDtypeStruct((1, LANES), jnp.float32),
            grid_spec=pltpu.PrefetchScalarGridSpec(
                num_scalar_prefetch=0,
                grid=(blocks,),
                in_specs=[pl.BlockSpec((tile_rows, LANES), lambda j: (j, 0)),
                          pl.BlockSpec((tile_rows, LANES), lambda j: (j, 0))],
                out_specs=pl.BlockSpec((1, LANES), lambda j: (0, 0))),
            compiler_params=pltpu.CompilerParams(
                dimension_semantics=("arbitrary",),
                vmem_limit_bytes=VMEM_LIMIT_BYTES),
        )(x2, t2)
        total = total + jnp.sum(partial)

    if n_kernel < n:
        # Ragged remainder handled with plain fused JAX (no pad, no extra copy
        # of the main body).
        x_tail = x[n_kernel:].astype(jnp.float32)
        t_tail = t[n_kernel:]
        total = total + jnp.sum(_focal_elementwise(
            x_tail, t_tail, gamma=float(gamma), alpha0=alpha0, alpha1=alpha1))

    if size_average:
        return total / jnp.float32(max(n, 1))   # guard against n == 0
    return total


def _focal_loss_ref(outputs, targets, *, gamma, alpha, size_average):
    """Pure-JAX reference mirroring the PyTorch forward exactly."""
    p = jax.nn.sigmoid(outputs.reshape(-1).astype(jnp.float32))
    t = targets.reshape(-1).astype(jnp.int32)
    probs = jnp.stack([1.0 - p, p], axis=1)
    pt = jnp.take_along_axis(probs, t[:, None], axis=1)[:, 0]
    logpt = jnp.take_along_axis(jnp.log(probs + EPS), t[:, None], axis=1)[:, 0]
    if alpha is not None:
        a = jnp.array([1.0 - alpha, alpha], jnp.float32) if isinstance(
            alpha, (float, int)) else jnp.array(alpha, jnp.float32)
        logpt = logpt * a[t]
    loss = -1.0 * (1.0 - pt) ** gamma * logpt
    return loss.mean() if size_average else loss.sum()


if __name__ == "__main__":
    key = jax.random.PRNGKey(0)
    kx, kt = jax.random.split(key)

    # Raw logits, NCHW-shaped like a conv head output; flattened inside.
    x = jax.random.normal(kx, (2, 4, 16, 16), dtype=jnp.float32)
    targets = jax.random.bernoulli(kt, 0.3, (2, 4, 16, 16)).astype(jnp.float32)

    gamma, alpha, size_average = 2.0, 0.25, True

    loss = focal_loss(x, targets, gamma=gamma, alpha=alpha,
                      size_average=size_average)
    loss = jax.block_until_ready(loss)

    ref = _focal_loss_ref(x, targets, gamma=gamma, alpha=alpha,
                          size_average=size_average)
    assert jnp.allclose(loss, ref, rtol=1e-5, atol=1e-5), (loss, ref)

    print("KERNEL_OK")
</pallas_src>

<mosaic_0001>
module attributes {stable_mosaic.version = 11 : i64} {
  func.func @_focal_kernel(%arg0: i32, %arg1: memref<16x128xf32, #tpu.memory_space<vmem>>, %arg2: memref<16x128xf32, #tpu.memory_space<vmem>>, %arg3: memref<1x128xf32, #tpu.memory_space<vmem>>) attributes {dimension_semantics = [#tpu.dimension_semantics<arbitrary>], iteration_bounds = array<i64: 1>, scalar_prefetch = 0 : i64, scratch_operands = 0 : i64, tpu.core_type = #tpu.core_type<tc>, window_params = [{transform_indices = @transform_0, window_bounds = array<i64: 16, 128>}, {transform_indices = @transform_1, window_bounds = array<i64: 16, 128>}, {pipeline_mode = #tpu.pipeline_mode<synchronous>, transform_indices = @transform_2, window_bounds = array<i64: 1, 128>}]} {
    %c0_i32 = arith.constant 0 : i32
    %0 = arith.cmpi eq, %arg0, %c0_i32 : i32
    %1 = arith.extui %0 : i1 to i32
    %c0_i32_0 = arith.constant 0 : i32
    %2 = arith.cmpi ne, %1, %c0_i32_0 : i32
    scf.if %2 {
      %cst_18 = arith.constant 0.000000e+00 : f32
      %35 = vector.broadcast %cst_18 : f32 to vector<1x128xf32>
      %c0_19 = arith.constant 0 : index
      %c0_20 = arith.constant 0 : index
      %36 = vector.load %arg3[%c0_19, %c0_20] : memref<1x128xf32, #tpu.memory_space<vmem>>, vector<1x128xf32>
      tpu.vector_store %arg3[%c0_19, %c0_20], %35 {strides = array<i32>} : memref<1x128xf32, #tpu.memory_space<vmem>>, vector<1x128xf32>,
    } else {
    }
    %c0 = arith.constant 0 : index
    %c0_1 = arith.constant 0 : index
    %3 = vector.load %arg1[%c0, %c0_1] : memref<16x128xf32, #tpu.memory_space<vmem>>, vector<16x128xf32>
    %c0_2 = arith.constant 0 : index
    %c0_3 = arith.constant 0 : index
    %4 = vector.load %arg2[%c0_2, %c0_3] : memref<16x128xf32, #tpu.memory_space<vmem>>, vector<16x128xf32>
    %cst = arith.constant 1.000000e+00 : f32
    %5 = vector.broadcast %cst : f32 to vector<16x128xf32>
    %6 = arith.cmpf oge, %4, %5 : vector<16x128xf32>
    %cst_4 = arith.constant 0.000000e+00 : f32
    %7 = vector.broadcast %cst_4 : f32 to vector<16x128xf32>
    %8 = arith.subf %7, %3 : vector<16x128xf32>
    %9 = arith.select %6, %3, %8 : vector<16x128xi1>, vector<16x128xf32>
    %cst_5 = arith.constant 5.000000e-01 : f32
    %10 = vector.broadcast %cst_5 : f32 to vector<16x128xf32>
    %11 = arith.mulf %10, %9 : vector<16x128xf32>
    %12 = math.tanh %11 : vector<16x128xf32>
    %cst_6 = arith.constant 5.000000e-01 : f32
    %13 = vector.broadcast %cst_6 : f32 to vector<16x128xf32>
    %14 = arith.mulf %13, %12 : vector<16x128xf32>
    %cst_7 = arith.constant 5.000000e-01 : f32
    %15 = vector.broadcast %cst_7 : f32 to vector<16x128xf32>
    %16 = arith.addf %14, %15 : vector<16x128xf32>
    %cst_8 = arith.constant 1.000000e-10 : f32
    %17 = vector.broadcast %cst_8 : f32 to vector<16x128xf32>
    %18 = arith.addf %16, %17 : vector<16x128xf32>
    %19 = math.log %18 : vector<16x128xf32>
    %cst_9 = arith.constant 2.500000e-01 : f32
    %cst_10 = arith.constant 7.500000e-01 : f32
    %20 = vector.broadcast %cst_9 : f32 to vector<16x128xf32>
    %21 = vector.broadcast %cst_10 : f32 to vector<16x128xf32>
    %22 = arith.select %6, %20, %21 : vector<16x128xi1>, vector<16x128xf32>
    %23 = arith.mulf %19, %22 : vector<16x128xf32>
    %cst_11 = arith.constant 1.000000e+00 : f32
    %24 = vector.broadcast %cst_11 : f32 to vector<16x128xf32>
    %25 = arith.subf %24, %16 : vector<16x128xf32>
    %26 = arith.mulf %25, %25 : vector<16x128xf32>
    %cst_12 = arith.constant 0.000000e+00 : f32
    %27 = vector.broadcast %cst_12 : f32 to vector<16x128xf32>
    %28 = arith.subf %27, %26 : vector<16x128xf32>
    %29 = arith.mulf %28, %23 : vector<16x128xf32>
    %c0_13 = arith.constant 0 : index
    %c0_14 = arith.constant 0 : index
    %30 = vector.load %arg3[%c0_13, %c0_14] : memref<1x128xf32, #tpu.memory_space<vmem>>, vector<1x128xf32>
    %cst_15 = arith.constant dense<0.000000e+00> : vector<128xf32>
    %31 = vector.multi_reduction <add>, %29, %cst_15 [0] : vector<16x128xf32> to vector<128xf32>
    %32 = vector.shape_cast %31 : vector<128xf32> to vector<1x128xf32>
    %33 = arith.addf %30, %32 : vector<1x128xf32>
    %c0_16 = arith.constant 0 : index
    %c0_17 = arith.constant 0 : index
    %34 = vector.load %arg3[%c0_16, %c0_17] : memref<1x128xf32, #tpu.memory_space<vmem>>, vector<1x128xf32>
    tpu.vector_store %arg3[%c0_16, %c0_17], %33 {strides = array<i32>} : memref<1x128xf32, #tpu.memory_space<vmem>>, vector<1x128xf32>,
    return
  }
  func.func @transform_0(%arg0: i32) -> (i32, i32) {
    %c0_i32 = arith.constant 0 : i32
    %c0_i32_0 = arith.constant 0 : i32
    return %arg0, %c0_i32 : i32, i32
  }
  func.func @transform_1(%arg0: i32) -> (i32, i32) {
    %c0_i32 = arith.constant 0 : i32
    %c0_i32_0 = arith.constant 0 : i32
    return %arg0, %c0_i32 : i32, i32
  }
  func.func @transform_2(%arg0: i32) -> (i32, i32) {
    %c0_i32 = arith.constant 0 : i32
    %c0_i32_0 = arith.constant 0 : i32
    %c0_i32_1 = arith.constant 0 : i32
    return %c0_i32, %c0_i32_0 : i32, i32
  }
}

</mosaic_0001>

<llo_original>
// kernel: tpu_custom_call.1
$region0: #{tpu_custom_call.1}
  #allocation0 [shape = 'u32[]', space=smem, size = 0x4, offset = 0x4, fixed_abs, tag = 'smem constant byte address 0x4 - core index']
  #allocation1 [shape = 'u32[72,128]{1,0:T(1,128)}', space=vmem, size = 0x9000, scoped, tag = 'internal scratch']
  %s0 = inlined_call_operand.hbm [shape: f32[16,128], index: 0, kind: input, shape index: {}]
  %s1 = inlined_call_operand.hbm [shape: f32[16,128], index: 1, kind: input, shape index: {}]
  %s2 = inlined_call_operand.hbm [shape: f32[1,128], index: 2, kind: output, shape index: {}]
  %s3 = sld [smem:[#allocation0]]
  $region30: #{tpu_custom_call.1} parent=0
    _
  %s5 = ssub.s32 1, %s3
  %s6 = scalar_select 0, %s5, %s3
  $region1: #{tpu_custom_call.1} parent=0
    #allocation2 [shape = 'u8[8192]{0}', space=vmem, size = 0x2000, scoped, tag = 'input window, operand 0, single buffered']
    #allocation3 [shape = 's32[1]{0}', space=sflag, size = 0x4, scoped, tag = 'scoped memory for tpu_custom_call.1']
    #allocation4 [shape = 's32[1]{0}', space=sflag, size = 0x4, scoped, tag = 'scoped memory for tpu_custom_call.1']
    #allocation5 [shape = 'u8[8192]{0}', space=vmem, size = 0x2000, scoped, tag = 'input window, operand 1, single buffered']
    #allocation6 [shape = 's32[1]{0}', space=sflag, size = 0x4, scoped, tag = 'scoped memory for tpu_custom_call.1']
    #allocation7 [shape = 'u8[512]{0}', space=vmem, size = 0x400, scoped, tag = 'output window, operand 0, single buffered']
    %7 = vsyncpa [#allocation3], 0
    %8 = vsyncpa [#allocation6], 0
    %9 = vsyncpa [#allocation4], 0
    // Predicated region
    $region2: #{tpu_custom_call.1} parent=1 // pred_check
      _
    $region3: #{tpu_custom_call.1} parent=1 // pred_check_branch
      %11 = sbr.rel (0) target = $region5
    $region4: #{tpu_custom_call.1} parent=1 // pred_region
      %13 = vsyncadd [#allocation3], 0
      %s14 = sshll.u32 %s0, 4
      %s15 = int_to_ptr.hbm [resolvable:$true] %s14
      %s16 = sshll.u32 [#allocation2], 4
      %s17 = int_to_ptr.vmem [resolvable:$true] %s16
      %22 = dma.hbm_to_vmem [thread:$0]  %s15, 256, %s17, [#allocation3], 128, 128, 8
    $region5: #{tpu_custom_call.1} parent=1 // pred_fallthru
      _
    // Predicated region
    $region6: #{tpu_custom_call.1} parent=1 // pred_check
      _
    $region7: #{tpu_custom_call.1} parent=1 // pred_check_branch
      %24 = sbr.rel (0) target = $region9
    $region8: #{tpu_custom_call.1} parent=1 // pred_region
      %26 = vsyncadd [#allocation6], 0
      %s27 = sshll.u32 %s1, 4
      %s28 = int_to_ptr.hbm [resolvable:$true] %s27
      %s29 = sshll.u32 [#allocation5], 4
      %s30 = int_to_ptr.vmem [resolvable:$true] %s29
      %35 = dma.hbm_to_vmem [thread:$0]  %s28, 256, %s30, [#allocation6], 128, 128, 8
    $region9: #{tpu_custom_call.1} parent=1 // pred_fallthru
      _
    // Predicated region
    $region10: #{tpu_custom_call.1} parent=1 // pred_check
      _
    $region11: #{tpu_custom_call.1} parent=1 // pred_check_branch
      %37 = sbr.rel (0) target = $region13
    $region12: #{tpu_custom_call.1} parent=1 // pred_region
      %39 = dma.done [#allocation3], 256
    $region13: #{tpu_custom_call.1} parent=1 // pred_fallthru
      _
    // Predicated region
    $region14: #{tpu_custom_call.1} parent=1 // pred_check
      _
    $region15: #{tpu_custom_call.1} parent=1 // pred_check_branch
      %41 = sbr.rel (0) target = $region17
    $region16: #{tpu_custom_call.1} parent=1 // pred_region
      %43 = dma.done [#allocation6], 256
    $region17: #{tpu_custom_call.1} parent=1 // pred_fallthru
      _
    %p44 = scmp.eq.s32.totalorder 0, 0
    // Predicated region
    $region18: #{tpu_custom_call.1} parent=1 // pred_check
      %p45 = pneg %p44
    $region19: #{tpu_custom_call.1} parent=1 // pred_check_branch
      %47 = sbr.rel (%p45) target = $region21
    $region20: #{tpu_custom_call.1} parent=1 // pred_region
      %48 = vst [vmem:[#allocation7] sm:$0x1] 0.0
    $region21: #{tpu_custom_call.1} parent=1 // pred_fallthru
      _
    %v49 = vld [vmem:[#allocation2] sm:$0xff]
    %v50 = vld [vmem:[#allocation2 + $0x8] sm:$0xff]
    %v51 = vld [vmem:[#allocation5] sm:$0xff]
    %v52 = vld [vmem:[#allocation5 + $0x8] sm:$0xff]
    %vm53 = vcmp.ge.f32.partialorder %v51, 1.0
    %vm54 = vcmp.ge.f32.partialorder %v52, 1.0
    %v55 = vsub.f32 0.0, %v49
    %v56 = vsub.f32 0.0, %v50
    %v57 = vsel %vm53, %v49, %v55
    %v58 = vsel %vm54, %v50, %v56
    %v59 = vmul.f32 %v57, 0.5
    %v60 = vmul.f32 %v58, 0.5
    %v61 = vtanh.pop %v59
    %v62 = vtanh.pop %v60
    %v63 = vmul.f32 %v61, 0.5
    %v64 = vmul.f32 %v62, 0.5
    %v65 = vadd.f32 %v63, 0.5
    %v66 = vadd.f32 %v64, 0.5
    %v67 = vadd.f32 %v65, 1e-10
    %v68 = vadd.f32 %v66, 1e-10
    %v69 = vlog2.pop %v67
    %v70 = vmul.f32 %v69, 0.6931472
    %v71 = vlog2.pop %v68
    %v72 = vmul.f32 %v71, 0.6931472
    %v73 = vsel %vm53, 0.25, 0.75
    %v74 = vsel %vm54, 0.25, 0.75
    %v75 = vmul.f32 %v70, %v73
    %v76 = vmul.f32 %v72, %v74
    %v77 = vsub.f32 1.0, %v65
    %v78 = vsub.f32 1.0, %v66
    %v79 = vmul.f32 %v77, %v77
    %v80 = vmul.f32 %v78, %v78
    %v81 = vsub.f32 0.0, %v79
    %v82 = vsub.f32 0.0, %v80
    %v83 = vmul.f32 %v81, %v75
    %v84 = vmul.f32 %v82, %v76
    %v85 = vld [vmem:[#allocation7] sm:$0x1]
    %v86 = vadd.f32 %v83, %v84
    %v87 = vrot.slane %v86, 4
    %v88 = vadd.f32 %v86, %v87
    %v89 = vrot.slane %v88, 2
    %v90 = vadd.f32 %v88, %v89
    %v91 = vrot.slane %v90, 1
    %v92 = vadd.f32 %v90, %v91
    %v93 = vadd.f32 %v85, %v92
    %94 = vst [vmem:[#allocation7] sm:$0x1] %v93
    // Predicated region
    $region22: #{tpu_custom_call.1} parent=1 // pred_check
      _
    $region23: #{tpu_custom_call.1} parent=1 // pred_check_branch
      %96 = sbr.rel (0) target = $region25
    $region24: #{tpu_custom_call.1} parent=1 // pred_region
      %98 = vsyncadd [#allocation4], 0
      %s100 = sshll.u32 [#allocation7], 4
      %s101 = int_to_ptr.vmem [resolvable:$true] %s100
      %s102 = sshll.u32 %s2, 4
      %s103 = int_to_ptr.hbm [resolvable:$true] %s102
      %105 = dma.vmem_to_hbm [thread:$0]  %s101, 16, %s103, [#allocation4]
    $region25: #{tpu_custom_call.1} parent=1 // pred_fallthru
      _
    // Predicated region
    $region26: #{tpu_custom_call.1} parent=1 // pred_check
      _
    $region27: #{tpu_custom_call.1} parent=1 // pred_check_branch
      %107 = sbr.rel (0) target = $region29
    $region28: #{tpu_custom_call.1} parent=1 // pred_region
      %109 = dma.done [#allocation4], 16
    $region29: #{tpu_custom_call.1} parent=1 // pred_fallthru
      _
    %110 = vsyncpa [#allocation3], 1
    %111 = vsyncpa [#allocation6], 1
    %112 = vsyncpa [#allocation4], 1

</llo_original>
